<compile_context>
chip_gen: v7x
topology: tpu7x:2x2x1
jax: 0.10.0
libtpu: 0.0.40
codegen_flags: <defaults>
</compile_context>

<pallas_src>
import math

import jax
import jax.numpy as jnp
from jax.experimental import pallas as pl
from jax.experimental.pallas import tpu as pltpu

# ---- ArcFace hyperparameters (same as the PyTorch __init__ defaults) -------
SCALE = 64.0
MARGIN = 0.5
COS_M = math.cos(MARGIN)
SIN_M = math.sin(MARGIN)
THETA = math.cos(math.pi - MARGIN)
SINMM = math.sin(math.pi - MARGIN) * MARGIN
EASY_MARGIN = False


def _round_up(x: int, m: int) -> int:
    return ((x + m - 1) // m) * m


def _hw_caps():
    """Generation-aware (row_tile_cap, col_tile_cap, vmem_limit_bytes).

    v7x:  64 MiB physical VMEM / TC but ~3.2 TB/s HBM -> use ~8 MiB f32 blocks
          so the ~0.35 us per-step pipeline overhead stays under ~7%;
          48 MiB scoped limit leaves headroom under the 64 MiB physical cap.
    v5e / v6e (128 MiB VMEM): 4 MiB f32 blocks already sit at ~85% of the HBM
          roofline; 32 MiB scoped limit covers the double-buffered in+out
          blocks and exceeds v5e's 16 MiB default scoped VMEM.
    """
    try:
        info = pltpu.get_tpu_info()
        vmem = getattr(info, "vmem_capacity_bytes", None)
    except Exception:  # interpret mode / unknown device -> conservative caps
        vmem = None
    if vmem is not None and vmem <= 64 * 1024 * 1024:
        return 1024, 2048, 48 * 1024 * 1024   # v7x
    return 512, 2048, 32 * 1024 * 1024         # v5e / v6e / fallback


def arcface_kernel(labels_ref, logits_ref, out_ref):
    """Applies the ArcFace margin to the target-class logit of each row.

    labels_ref: (tn, 1)  int32  -- label per row, -1 means "skip this row"
    logits_ref: (tn, tc) f32/bf16 -- cosine logits for this (row, class) tile
    out_ref:    (tn, tc) f32/bf16 -- scaled logits with margin applied
    """
    x = logits_ref[...]
    tn, tc = x.shape

    # Tile-local target-class index per row.  Rows with label == -1 (or whose
    # target class lives in a different class tile) can never match because
    # the local label becomes negative / >= tc.
    c0 = pl.program_id(1) * tc
    lab_local = labels_ref[...] - c0                                  # (tn, 1)
    col = jax.lax.broadcasted_iota(jnp.int32, (tn, tc), 1)            # (tn, tc)
    is_target = col == lab_local                                      # (tn, tc)

    # Gather the target logit per row with a masked reduce (single non-zero
    # term per row, so the sum is exact in any dtype), then do the margin math
    # on the narrow (tn, 1) column only, in f32.
    t = jnp.sum(jnp.where(is_target, x, jnp.zeros((), x.dtype)),
                axis=-1, keepdims=True).astype(jnp.float32)           # (tn, 1)
    # Clamp so rows whose target is not in this tile (t == 0) and fp noise at
    # |cos| ~ 1 never produce NaN.
    sin_theta = jnp.sqrt(jnp.maximum(1.0 - t * t, 0.0))
    cos_theta_m = t * COS_M - sin_theta * SIN_M
    if EASY_MARGIN:
        modified = jnp.where(t > 0.0, cos_theta_m, t)
    else:
        modified = jnp.where(t > THETA, cos_theta_m, t - SINMM)

    # Scatter back with one select, then scale (64.0 is exact in bf16).
    out_ref[...] = jnp.where(is_target, modified.astype(x.dtype), x) * SCALE


def arcface(logits: jax.Array, labels: jax.Array, *, tile_n=None, tile_c=None,
            donate_logits: bool = False):
    """logits: (N, C) f32/bf16, labels: (N,) int. Returns (N, C) same dtype.

    NOTE: labels >= C (or < -1) silently mean "no target"; PyTorch's gather
    would raise instead.
    Set donate_logits=True ONLY if the logits buffer is genuinely dead after
    this call (e.g. donated at the enclosing jit boundary); otherwise XLA adds
    a defensive copy and the aliasing saves nothing.
    """
    n, c = logits.shape
    dtype = logits.dtype
    row_unit = 16 if dtype == jnp.bfloat16 else 8
    row_cap, col_cap, vmem_limit = _hw_caps()

    auto_tiles = tile_n is None and tile_c is None
    if tile_n is None:
        tile_n = min(_round_up(n, row_unit), row_cap)
    if tile_c is None:
        tile_c = min(_round_up(c, 128), col_cap)

    # v7x has 2 TensorCores: for small problems force >= 2 blocks along one
    # axis so both cores get work (harmless on single-TC v5e/v6e).
    if auto_tiles and _round_up(n, tile_n) == tile_n and _round_up(c, tile_c) == tile_c:
        if tile_c >= 256:
            tile_c //= 2
        elif tile_n >= 2 * row_unit:
            tile_n //= 2

    # Pad to tile multiples; padded rows get label -1 (never modified), padded
    # class columns are unreachable since labels < C.
    pn = _round_up(n, tile_n)
    pc = _round_up(c, tile_c)

    labels2d = labels.astype(jnp.int32).reshape(n, 1)
    if pn != n:
        labels2d = jnp.pad(labels2d, ((0, pn - n), (0, 0)), constant_values=-1)
    x = logits
    if pn != n or pc != c:
        x = jnp.pad(x, ((0, pn - n), (0, pc - c)))

    grid = (pn // tile_n, pc // tile_c)

    out = pl.pallas_call(
        arcface_kernel,
        out_shape=jax.ShapeDtypeStruct((pn, pc), dtype),
        grid_spec=pltpu.PrefetchScalarGridSpec(
            num_scalar_prefetch=0,
            grid=grid,
            in_specs=[
                pl.BlockSpec((tile_n, 1), lambda i, j: (i, 0)),       # labels
                pl.BlockSpec((tile_n, tile_c), lambda i, j: (i, j)),  # logits
            ],
            out_specs=pl.BlockSpec((tile_n, tile_c), lambda i, j: (i, j)),
        ),
        input_output_aliases={1: 0} if donate_logits else {},
        compiler_params=pltpu.CompilerParams(
            dimension_semantics=("parallel", "parallel"),
            vmem_limit_bytes=vmem_limit,
        ),
    )(labels2d, x)

    if pn != n or pc != c:
        out = out[:n, :c]
    return out


def arcface_reference(logits, labels):
    """Pure-JAX reference mirroring the PyTorch forward (f32 math)."""
    n, c = logits.shape
    logits = logits.astype(jnp.float32)
    col = jnp.arange(c, dtype=jnp.int32)[None, :]
    lab = labels.astype(jnp.int32)[:, None]
    is_target = jnp.logical_and(col == lab, lab != -1)
    t = logits
    sin_theta = jnp.sqrt(jnp.maximum(1.0 - t * t, 0.0))
    cos_theta_m = t * COS_M - sin_theta * SIN_M
    modified = jnp.where(t > THETA, cos_theta_m, t - SINMM)
    return jnp.where(is_target, modified, logits) * SCALE


if __name__ == "__main__":
    key = jax.random.PRNGKey(0)
    k1, k2 = jax.random.split(key)

    N, C = 16, 256  # small batch, 256 classes (lane-aligned)
    # Cosine-similarity logits in [-1, 1], like the ArcFace head produces.
    logits = jax.random.uniform(k1, (N, C), jnp.float32, minval=-1.0, maxval=1.0)
    labels = jax.random.randint(k2, (N,), 0, C, dtype=jnp.int32)
    # Mark a couple of rows as ignored (label == -1), as the module allows.
    labels = labels.at[1].set(-1).at[5].set(-1)

    ref = arcface_reference(logits, labels)

    # 1) Small explicit tiles: exercises the 2-D grid, the tile-local iota
    #    offset, and the per-row gather/scatter path.
    out = jax.block_until_ready(arcface(logits, labels, tile_n=8, tile_c=128))
    assert out.shape == (N, C) and out.dtype == jnp.float32
    assert jnp.allclose(out, ref, atol=1e-5, rtol=1e-5), "mismatch (explicit tiles)"

    # 2) Auto-tiled path (also exercises the ">= 2 grid blocks" split).
    out2 = jax.block_until_ready(arcface(logits, labels))
    assert jnp.allclose(out2, ref, atol=1e-5, rtol=1e-5), "mismatch (auto tiles)"

    # 3) Non-divisible shapes exercise the padding path.
    N2, C2 = 13, 200
    logits3 = jax.random.uniform(k1, (N2, C2), jnp.float32, minval=-1.0, maxval=1.0)
    labels3 = jax.random.randint(k2, (N2,), 0, C2, dtype=jnp.int32).at[0].set(-1)
    out3 = jax.block_until_ready(arcface(logits3, labels3, tile_n=8, tile_c=128))
    assert out3.shape == (N2, C2)
    assert jnp.allclose(out3, arcface_reference(logits3, labels3),
                        atol=1e-5, rtol=1e-5), "mismatch (padded)"

    # 4) bf16 I/O path (margin math still runs in f32 on the gathered column).
    logits_bf = logits.astype(jnp.bfloat16)
    out_bf = jax.block_until_ready(arcface(logits_bf, labels))
    assert out_bf.dtype == jnp.bfloat16
    ref_bf = arcface_reference(logits_bf.astype(jnp.float32), labels)
    assert jnp.allclose(out_bf.astype(jnp.float32), ref_bf,
                        atol=0.5, rtol=0.02), "mismatch (bf16)"

    print("KERNEL_OK")
</pallas_src>

<mosaic_0001>
module attributes {stable_mosaic.version = 11 : i64} {
  func.func @arcface_kernel(%arg0: i32, %arg1: i32, %arg2: memref<8x1xi32, #tpu.memory_space<vmem>>, %arg3: memref<8x128xf32, #tpu.memory_space<vmem>>, %arg4: memref<8x128xf32, #tpu.memory_space<vmem>>) attributes {dimension_semantics = [#tpu.dimension_semantics<parallel>, #tpu.dimension_semantics<parallel>], iteration_bounds = array<i64: 2, 2>, scalar_prefetch = 0 : i64, scratch_operands = 0 : i64, tpu.core_type = #tpu.core_type<tc>, window_params = [{transform_indices = @transform_0, window_bounds = array<i64: 8, 1>}, {transform_indices = @transform_1, window_bounds = array<i64: 8, 128>}, {transform_indices = @transform_2, window_bounds = array<i64: 8, 128>}]} {
    %c0 = arith.constant 0 : index
    %c0_0 = arith.constant 0 : index
    %0 = vector.load %arg3[%c0, %c0_0] : memref<8x128xf32, #tpu.memory_space<vmem>>, vector<8x128xf32>
    %c128_i32 = arith.constant 128 : i32
    %1 = arith.muli %arg1, %c128_i32 : i32
    %c0_1 = arith.constant 0 : index
    %c0_2 = arith.constant 0 : index
    %2 = vector.load %arg2[%c0_1, %c0_2] : memref<8x1xi32, #tpu.memory_space<vmem>>, vector<8x1xi32>
    %3 = vector.broadcast %1 : i32 to vector<8x1xi32>
    %4 = arith.subi %2, %3 : vector<8x1xi32>
    %5 = tpu.iota {dimensions = array<i32: 1>} : vector<8x128xi32>
    %6 = vector.broadcast %4 : vector<8x1xi32> to vector<8x128xi32>
    %7 = arith.cmpi eq, %5, %6 : vector<8x128xi32>
    %cst = arith.constant 0.000000e+00 : f32
    %8 = vector.broadcast %cst : f32 to vector<8x128xf32>
    %9 = arith.select %7, %0, %8 : vector<8x128xi1>, vector<8x128xf32>
    %cst_3 = arith.constant dense<0.000000e+00> : vector<8xf32>
    %10 = vector.multi_reduction <add>, %9, %cst_3 [1] : vector<8x128xf32> to vector<8xf32>
    %11 = vector.shape_cast %10 : vector<8xf32> to vector<8x1xf32>
    %12 = arith.mulf %11, %11 : vector<8x1xf32>
    %cst_4 = arith.constant 1.000000e+00 : f32
    %13 = vector.broadcast %cst_4 : f32 to vector<8x1xf32>
    %14 = arith.subf %13, %12 : vector<8x1xf32>
    %cst_5 = arith.constant 0.000000e+00 : f32
    %15 = vector.broadcast %cst_5 : f32 to vector<8x1xf32>
    %16 = arith.maximumf %14, %15 : vector<8x1xf32>
    %17 = math.sqrt %16 : vector<8x1xf32>
    %cst_6 = arith.constant 0.87758255 : f32
    %18 = vector.broadcast %cst_6 : f32 to vector<8x1xf32>
    %19 = arith.mulf %11, %18 : vector<8x1xf32>
    %cst_7 = arith.constant 0.47942555 : f32
    %20 = vector.broadcast %cst_7 : f32 to vector<8x1xf32>
    %21 = arith.mulf %17, %20 : vector<8x1xf32>
    %22 = arith.subf %19, %21 : vector<8x1xf32>
    %cst_8 = arith.constant -0.87758255 : f32
    %23 = vector.broadcast %cst_8 : f32 to vector<8x1xf32>
    %24 = arith.cmpf ogt, %11, %23 : vector<8x1xf32>
    %cst_9 = arith.constant 0.239712775 : f32
    %25 = vector.broadcast %cst_9 : f32 to vector<8x1xf32>
    %26 = arith.subf %11, %25 : vector<8x1xf32>
    %27 = arith.select %24, %22, %26 : vector<8x1xi1>, vector<8x1xf32>
    %28 = vector.shape_cast %27 : vector<8x1xf32> to vector<8x1xf32>
    %29 = vector.broadcast %28 : vector<8x1xf32> to vector<8x128xf32>
    %30 = arith.select %7, %29, %0 : vector<8x128xi1>, vector<8x128xf32>
    %cst_10 = arith.constant 6.400000e+01 : f32
    %31 = vector.broadcast %cst_10 : f32 to vector<8x128xf32>
    %32 = arith.mulf %30, %31 : vector<8x128xf32>
    %c0_11 = arith.constant 0 : index
    %c0_12 = arith.constant 0 : index
    %33 = vector.load %arg4[%c0_11, %c0_12] : memref<8x128xf32, #tpu.memory_space<vmem>>, vector<8x128xf32>
    tpu.vector_store %arg4[%c0_11, %c0_12], %32 {strides = array<i32>} : memref<8x128xf32, #tpu.memory_space<vmem>>, vector<8x128xf32>,
    return
  }
  func.func @transform_0(%arg0: i32, %arg1: i32) -> (i32, i32) {
    %c0_i32 = arith.constant 0 : i32
    %c0_i32_0 = arith.constant 0 : i32
    return %arg0, %c0_i32 : i32, i32
  }
  func.func @transform_1(%arg0: i32, %arg1: i32) -> (i32, i32) {
    %c0_i32 = arith.constant 0 : i32
    return %arg0, %arg1 : i32, i32
  }
  func.func @transform_2(%arg0: i32, %arg1: i32) -> (i32, i32) {
    %c0_i32 = arith.constant 0 : i32
    return %arg0, %arg1 : i32, i32
  }
}

</mosaic_0001>

<llo_original>
// kernel: tpu_custom_call.1
$region0: #{tpu_custom_call.1}
  #allocation0 [shape = 'u32[]', space=smem, size = 0x4, offset = 0x4, fixed_abs, tag = 'smem constant byte address 0x4 - core index']
  #allocation1 [shape = 'u32[144,128]{1,0:T(1,128)}', space=vmem, size = 0x12000, scoped, tag = 'internal scratch']
  %s0 = inlined_call_operand.vmem [shape: s32[16,1], index: 0, kind: input, shape index: {}]
  %s1 = inlined_call_operand.hbm [shape: f32[16,256], index: 1, kind: input, shape index: {}]
  %s2 = inlined_call_operand.hbm [shape: f32[16,256], index: 2, kind: output, shape index: {}]
  %s3 = sld [smem:[#allocation0]]
  $region45: #{tpu_custom_call.1} parent=0
    _
  %s5 = ssub.s32 1, %s3
  %s6 = scalar_select 0, %s5, %s3
  $region1: #{tpu_custom_call.1} parent=0
    #allocation2 [shape = 'u8[8192]{0}', space=vmem, size = 0x2000, scoped, tag = 'input window, operand 1']
    #allocation3 [shape = 's32[2]{0}', space=sflag, size = 0x8, scoped, tag = 'scoped memory for tpu_custom_call.1']
    #allocation4 [shape = 's32[2]{0}', space=sflag, size = 0x8, scoped, tag = 'scoped memory for tpu_custom_call.1']
    #allocation5 [shape = 'u8[8192]{0}', space=vmem, size = 0x2000, scoped, tag = 'output window, operand 0']
    %7 = vsyncpa [#allocation3], 0
    %s8 = scalar_lea.sflag [#allocation3], 1
    %9 = vsyncpa %s8, 0
    %10 = vsyncpa [#allocation4], 0
    %s11 = scalar_lea.sflag [#allocation4], 1
    %12 = vsyncpa %s11, 0
    loop: start=0, step=1, limit=6
    $region2: #{tpu_custom_call.1} parent=1 // loop_pre_header
      _
    $region3: #{tpu_custom_call.1} parent=1 // loop_header
      %s14 = sphi 0, %s18
      %p15 = scmp.ge.s32.totalorder %s14, 6
      %s21 = sphi 0, %s33
      %s22 = sphi 0, %s29
      %s23 = sphi 0, %s21
      %s24 = sphi 0, %s22
      %s25 = sphi 0, %s23
      %s26 = sphi 0, %s24
      %s36 = sphi 0, %s38
      %s39 = sphi 0, %s36
      %s40 = sphi 0, %s39
      %s56 = sphi 0, %s40
      %s64 = sphi 0, %s66
      %s67 = sphi 0, %s64
      %s68 = sphi 0, %s67
      %s84 = sphi 0, %s68
      %s92 = sphi 0, %s94
      %s95 = sphi 0, %s92
      %s96 = sphi 0, %s95
      %s112 = sphi 0, %s96
    $region4: #{tpu_custom_call.1} parent=1 // loop_header_branch
      %17 = sbr.rel (%p15) target = $region8
    $region5: #{tpu_custom_call.1} parent=1 // loop_body
      %s19 = ssub.s32 %s14, 1
      %s20 = ssub.s32 %s14, 2
      %s27 = sadd.s32 1, %s22
      %p28 = scmp.ge.s32.totalorder %s27, 2
      %s29 = scalar_select %p28, 0, %s27
      %s30 = sadd.s32 1, %s21
      %s31 = scalar_select %p28, %s30, %s21
      %p32 = scmp.ge.s32.totalorder %s31, 2
      %s33 = scalar_select %p32, 0, %s31
      %s34 = ssub.s32 %s21, %s33
      %p35 = scmp.eq.s32.totalorder %s34, 0
      %s37 = sadd.s32 %s36, 1
      %s38 = scalar_select %p35, %s36, %s37
      %p41 = pneg %p35
      %p42 = scmp.eq.s32.totalorder %s14, 3
      %p43 = por %p41, %p42
      %p44 = scmp.ne.s32.totalorder %s36, %s39
      %p45 = scmp.eq.s32.totalorder %s14, 0
      %p46 = por %p44, %p45
      %p47 = scmp.ne.s32.totalorder %s36, %s39
      %p48 = scmp.eq.s32.totalorder %s19, 3
      %p49 = por %p47, %p48
      %p50 = scmp.ne.s32.totalorder %s39, %s40
      %p51 = scmp.eq.s32.totalorder %s19, 0
      %p52 = por %p50, %p51
      %p53 = scmp.ne.s32.totalorder %s39, %s40
      %p54 = scmp.eq.s32.totalorder %s20, 3
      %p55 = por %p53, %p54
      %p57 = scmp.ne.s32.totalorder %s40, %s56
      %p58 = scmp.eq.s32.totalorder %s20, 0
      %p59 = por %p57, %p58
      %s60 = ssub.s32 %s21, %s33
      %s61 = ssub.s32 %s22, %s29
      %s62 = sor.u32 %s60, %s61
      %p63 = scmp.eq.s32.totalorder %s62, 0
      %s65 = sadd.s32 %s64, 1
      %s66 = scalar_select %p63, %s64, %s65
      %p69 = pneg %p63
      %p70 = scmp.eq.s32.totalorder %s14, 3
      %p71 = por %p69, %p70
      %p72 = scmp.ne.s32.totalorder %s64, %s67
      %p73 = scmp.eq.s32.totalorder %s14, 0
      %p74 = por %p72, %p73
      %p75 = scmp.ne.s32.totalorder %s64, %s67
      %p76 = scmp.eq.s32.totalorder %s19, 3
      %p77 = por %p75, %p76
      %p78 = scmp.ne.s32.totalorder %s67, %s68
      %p79 = scmp.eq.s32.totalorder %s19, 0
      %p80 = por %p78, %p79
      %p81 = scmp.ne.s32.totalorder %s67, %s68
      %p82 = scmp.eq.s32.totalorder %s20, 3
      %p83 = por %p81, %p82
      %p85 = scmp.ne.s32.totalorder %s68, %s84
      %p86 = scmp.eq.s32.totalorder %s20, 0
      %p87 = por %p85, %p86
      %s88 = ssub.s32 %s21, %s33
      %s89 = ssub.s32 %s22, %s29
      %s90 = sor.u32 %s88, %s89
      %p91 = scmp.eq.s32.totalorder %s90, 0
      %s93 = sadd.s32 %s92, 1
      %s94 = scalar_select %p91, %s92, %s93
      %p97 = pneg %p91
      %p98 = scmp.eq.s32.totalorder %s14, 3
      %p99 = por %p97, %p98
      %p100 = scmp.ne.s32.totalorder %s92, %s95
      %p101 = scmp.eq.s32.totalorder %s14, 0
      %p102 = por %p100, %p101
      %p103 = scmp.ne.s32.totalorder %s92, %s95
      %p104 = scmp.eq.s32.totalorder %s19, 3
      %p105 = por %p103, %p104
      %p106 = scmp.ne.s32.totalorder %s95, %s96
      %p107 = scmp.eq.s32.totalorder %s19, 0
      %p108 = por %p106, %p107
      %p109 = scmp.ne.s32.totalorder %s95, %s96
      %p110 = scmp.eq.s32.totalorder %s20, 3
      %p111 = por %p109, %p110
      %p113 = scmp.ne.s32.totalorder %s96, %s112
      %p114 = scmp.eq.s32.totalorder %s20, 0
      %p115 = por %p113, %p114
      %p116 = scmp.le.s32.totalorder 1, %s14
      %p117 = scmp.lt.s32.totalorder %s14, 5
      %p118 = pnand %p116, %p117
      %p119 = pneg %p118
      // Predicated region
      $region9: #{tpu_custom_call.1} parent=5 // pred_check
        _
      $region10: #{tpu_custom_call.1} parent=5 // pred_check_branch
        %121 = sbr.rel (%p118) target = $region12
      $region11: #{tpu_custom_call.1} parent=5 // pred_region
        %s122 = ssub.s32 %s14, 1
      $region12: #{tpu_custom_call.1} parent=5 // pred_fallthru
        _
      %p123 = scmp.lt.s32.totalorder %s14, 4
      // Predicated region
      $region13: #{tpu_custom_call.1} parent=5 // pred_check
        %p124 = pneg %p123
      $region14: #{tpu_custom_call.1} parent=5 // pred_check_branch
        %126 = sbr.rel (%p124) target = $region16
      $region15: #{tpu_custom_call.1} parent=5 // pred_region
        // Predicated region
        $region17: #{tpu_custom_call.1} parent=15 // pred_check
          %p127 = pneg %p46
        $region18: #{tpu_custom_call.1} parent=15 // pred_check_branch
          %129 = sbr.rel (%p127) target = $region20
        $region19: #{tpu_custom_call.1} parent=15 // pred_region
          %p130 = scmp.lt.s32.totalorder %s21, 1
          %s131 = scalar_select %p130, %s21, 1
          %s132 = smul.addr %s131, 8
          %s133 = scalar_lea.vmem %s0, %s132
        $region20: #{tpu_custom_call.1} parent=15 // pred_fallthru
          _
        // Predicated region
        $region21: #{tpu_custom_call.1} parent=15 // pred_check
          %p134 = pneg %p74
        $region22: #{tpu_custom_call.1} parent=15 // pred_check_branch
          %136 = sbr.rel (%p134) target = $region24
        $region23: #{tpu_custom_call.1} parent=15 // pred_region
          %s137 = sand.u32 %s64, 1
          %s138 = scalar_lea.sflag [#allocation3], %s137
          %s139 = sand.u32 %s64, 1
          %s140 = smul.addr %s139, 8
          %s141 = scalar_lea.vmem [#allocation2], %s140
          %s143 = ssub.s32 128, 128
          %144 = vsyncadd %s138, %s143
          %s145 = smul.addr %s21, 2
          %s146 = sadd.s32 %s22, %s145
          %s147 = smul.addr %s146, 128
          %s148 = scalar_lea.hbm %s1, %s147
          %s150 = sshll.u32 %s141, 4
          %s151 = int_to_ptr.vmem [resolvable:$true] %s150
          %153 = dma.hbm_to_vmem [thread:$0]  %s148, 128, %s151, %s138
        $region24: #{tpu_custom_call.1} parent=15 // pred_fallthru
          _
      $region16: #{tpu_custom_call.1} parent=5 // pred_fallthru
        _
      %p154 = scmp.le.s32.totalorder 1, %s14
      %p155 = scmp.lt.s32.totalorder %s14, 5
      %p156 = pnand %p154, %p155
      %p157 = pneg %p156
      // Predicated region
      $region25: #{tpu_custom_call.1} parent=5 // pred_check
        _
      $region26: #{tpu_custom_call.1} parent=5 // pred_check_branch
        %159 = sbr.rel (%p156) target = $region28
      $region27: #{tpu_custom_call.1} parent=5 // pred_region
        %s160 = ssub.s32 %s14, 1
        %s161 = sand.u32 %s67, 1
        %s162 = scalar_lea.sflag [#allocation3], %s161
        %s163 = sand.u32 %s67, 1
        %s164 = smul.addr %s163, 8
        %s165 = scalar_lea.vmem [#allocation2], %s164
        // Predicated region
        $region29: #{tpu_custom_call.1} parent=27 // pred_check
          %p166 = pneg %p80
        $region30: #{tpu_custom_call.1} parent=27 // pred_check_branch
          %168 = sbr.rel (%p166) target = $region32
        $region31: #{tpu_custom_call.1} parent=27 // pred_region
          %169 = dma.done %s162, 128
        $region32: #{tpu_custom_call.1} parent=27 // pred_fallthru
          _
        %p170 = scmp.lt.s32.totalorder %s23, 1
        %s171 = scalar_select %p170, %s23, 1
        %s172 = smul.addr %s171, 8
        %s173 = scalar_lea.vmem %s0, %s172
        %p174 = pneg %p52
        %p175 = pneg %p49
        %s176 = sand.u32 %s67, 1
        %s177 = scalar_lea.sflag [#allocation3], %s176
        %s178 = sand.u32 %s67, 1
        %s179 = smul.addr %s178, 8
        %s180 = scalar_lea.vmem [#allocation2], %s179
        %p181 = pneg %p80
        %p182 = pneg %p77
        %p183 = pneg %p108
        %p184 = pneg %p105
        %s185 = sand.u32 %s95, 1
        %s186 = scalar_lea.sflag [#allocation4], %s185
        %s187 = sand.u32 %s95, 1
        %s188 = smul.addr %s187, 8
        %s189 = scalar_lea.vmem [#allocation5], %s188
        %p190 = scmp.lt.s32.totalorder %s23, 1
        %s191 = scalar_select %p190, %s23, 1
        %s192 = smul.addr %s191, 8
        %s193 = scalar_lea.vmem %s0, %s192
        %v194 = vld [vmem:[%s165] sm:$0xff]
        %s195 = smul.u32 %s24, 128
        %v196 = vld [vmem:[%s193] sm:$0xff]
        %v197 = vstv %s195
        %v198 = vsub.s32 %v196, %v197
        %v199 = vlaneseq
        %v200 = vand.u32 %v199, 127
        %201 = vset.pattern.permute.xlu0 0
        %202 = vperm.xlu0 %201, %v198
        %v203 = vpop.permute.xlu0 %202
        %vm204 = vcmp.eq.s32.totalorder %v200, %v203
        %v205 = vsel %vm204, %v194, 0.0
        %206 = vadd.xlane.f32.xlu0 %v205
        %v207 = vpop.xlane.xlu0 %206
        %v208 = vmul.f32 %v207, %v207
        %v209 = vsub.f32 1.0, %v208
        %v210 = vmax.f32 %v209, 0.0
        %v211 = vrsqrt.pop %v210
        %v212 = vmul.f32 %v210, %v211
        %vm213 = vcmp.eq.f32.partialorder %v210, inf
        %v214 = vsel %vm213, %v210, %v212
        %vm215 = vcmp.eq.f32.partialorder %v210, 0.0
        %v216 = vand.u32 %v210, 2147483648
        %v217 = vsel %vm215, %v216, %v214
        %v218 = vmul.f32 %v207, 0.87758255
        %v219 = vmul.f32 %v217, 0.47942555
        %v220 = vsub.f32 %v218, %v219
        %vm221 = vcmp.gt.f32.partialorder %v207, -0.87758255
        %v222 = vsub.f32 %v207, 0.23971277
        %v223 = vsel %vm221, %v220, %v222
        %v224 = vsel %vm204, %v223, %v194
        %v225 = vmul.f32 %v224, 64.0
        %226 = vst [vmem:[%s189] sm:$0xff] %v225
        %s227 = sand.u32 %s95, 1
        %s228 = scalar_lea.sflag [#allocation4], %s227
        %s229 = sand.u32 %s95, 1
        %s230 = smul.addr %s229, 8
        %s231 = scalar_lea.vmem [#allocation5], %s230
        // Predicated region
        $region33: #{tpu_custom_call.1} parent=27 // pred_check
          %p232 = pneg %p105
        $region34: #{tpu_custom_call.1} parent=27 // pred_check_branch
          %234 = sbr.rel (%p232) target = $region36
        $region35: #{tpu_custom_call.1} parent=27 // pred_region
          %s236 = ssub.s32 128, 128
          %237 = vsyncadd %s228, %s236
          %s238 = smul.addr %s23, 2
          %s239 = sadd.s32 %s24, %s238
          %s240 = smul.addr %s239, 128
          %s241 = scalar_lea.hbm %s2, %s240
          %s243 = sshll.u32 %s231, 4
          %s244 = int_to_ptr.vmem [resolvable:$true] %s243
          %246 = dma.vmem_to_hbm [thread:$0]  %s244, 128, %s241, %s228
        $region36: #{tpu_custom_call.1} parent=27 // pred_fallthru
          _
      $region28: #{tpu_custom_call.1} parent=5 // pred_fallthru
        _
      %p247 = scmp.le.s32.totalorder 2, %s14
      // Predicated region
      $region37: #{tpu_custom_call.1} parent=5 // pred_check
        %p248 = pneg %p247
      $region38: #{tpu_custom_call.1} parent=5 // pred_check_branch
        %250 = sbr.rel (%p248) target = $region40
      $region39: #{tpu_custom_call.1} parent=5 // pred_region
        %s251 = ssub.s32 %s14, 2
        // Predicated region
        $region41: #{tpu_custom_call.1} parent=39 // pred_check
          %p252 = pneg %p111
        $region42: #{tpu_custom_call.1} parent=39 // pred_check_branch
          %254 = sbr.rel (%p252) target = $region44
        $region43: #{tpu_custom_call.1} parent=39 // pred_region
          %s255 = sand.u32 %s96, 1
          %s256 = scalar_lea.sflag [#allocation4], %s255
          %s257 = sand.u32 %s96, 1
          %s258 = smul.addr %s257, 8
          %s259 = scalar_lea.vmem [#allocation5], %s258
          %260 = dma.done %s256, 128
        $region44: #{tpu_custom_call.1} parent=39 // pred_fallthru
          _
      $region40: #{tpu_custom_call.1} parent=5 // pred_fallthru
        _
    $region6: #{tpu_custom_call.1} parent=1 // loop_footer
      %s18 = sadd.s32 1, %s14
    $region7: #{tpu_custom_call.1} parent=1 // loop_footer_branch
      %13 = sbr.rel target = $region3
    $region8: #{tpu_custom_call.1} parent=1 // loop_exit
      _
    %261 = vsyncpa [#allocation3], 1
    %s262 = scalar_lea.sflag [#allocation3], 1
    %263 = vsyncpa %s262, 1
    %264 = vsyncpa [#allocation4], 1
    %s265 = scalar_lea.sflag [#allocation4], 1
    %266 = vsyncpa %s265, 1

</llo_original>
